<compile_context>
chip_gen: v5e
topology: v5e:2x2
jax: 0.10.0
libtpu: 0.0.40
codegen_flags: <defaults>
</compile_context>

<pallas_src>
import jax
import jax.numpy as jnp
import numpy as np
from jax.experimental import pallas as pl
from jax.experimental.pallas import tpu as pltpu


def _round_up(x: int, m: int) -> int:
    return (x + m - 1) // m * m


def gcn_kernel(adj_ref, xk_ref, xi_ref, w_ref, o_ref, acc_ref):
    """One grid step (output-row tile i, reduction tile k).

    adj_ref: (tile, tile) bf16         tile of the aggregation matrix A
    xk_ref : (tile, B*Caug) bf16       folded [X | 1], reduction-axis slice
    xi_ref : (tile, B*Caug) f32        folded [X | 1], output-row slice
    w_ref  : (2, B*Caug, B*Cout_pad)   batch-block-diag fused weights:
                                       [0] = diag_B([Wo; bo]), [1] = diag_B([Ws; bs])
    o_ref  : (tile, B*Cout_pad)        folded output tile (lane-dense)
    acc_ref: (tile, B*Caug) f32        VMEM accumulator for A @ [X | 1]
    """
    k = pl.program_id(1)

    # Single-pass bf16 MXU aggregation, f32 accumulation. No f32 upcast of A.
    prod = jnp.dot(adj_ref[...], xk_ref[...], preferred_element_type=jnp.float32)

    @pl.when(k == 0)
    def _first():
        acc_ref[...] = prod

    @pl.when(k > 0)
    def _accumulate():
        acc_ref[...] += prod

    @pl.when(k == pl.num_programs(1) - 1)
    def _finalize():
        # out = [A@X | deg] @ diag_B([Wo; bo])  +  [X | 1] @ diag_B([Ws; bs])
        proj = jnp.dot(acc_ref[...], w_ref[0], preferred_element_type=jnp.float32)
        proj = proj + jnp.dot(xi_ref[...], w_ref[1], preferred_element_type=jnp.float32)
        o_ref[...] = proj.astype(o_ref.dtype)


def graph_convolution_pallas(x_bnc, w_self, b_self, w_other, b_other, adj_bf16,
                             *, max_tile=1024):
    """x_bnc: (B, N, Cin) f32; weights (Cin, Cout); biases (Cout,); adj (N, N) bf16."""
    if max_tile % 128 != 0:
        raise ValueError("max_tile must be a multiple of 128 (lane tiling).")

    B, N, Cin = x_bnc.shape
    Cout = w_self.shape[1]
    Caug = Cin + 1                          # [X | 1] augmentation column

    # ---- tile plan (keeps VMEM bounded on v7x's 64 MiB) ----
    if N <= max_tile:
        tile = _round_up(N, 8)              # single full-extent tile (sublane aligned)
    else:
        tile = max_tile                     # multiple of 128 -> valid lane tiling of A
    n_tiles = pl.cdiv(N, tile)
    N_pad = n_tiles * tile
    Cout_pad = _round_up(Cout, 128)         # lane-dense output (unmasked vst)
    BCaug = B * Caug
    BCout = B * Cout_pad

    # ---- wrapper-side layout glue (cheap XLA, not the hot path) ----
    # Fold batch into the lane dim: x_fold[n, b*Caug + c] = [X|1][b, n, c]
    x_aug = jnp.concatenate(
        [x_bnc, jnp.ones((B, N, 1), dtype=x_bnc.dtype)], axis=-1)          # (B, N, Caug)
    x_fold = jnp.transpose(x_aug, (1, 0, 2)).reshape(N, BCaug)             # (N, B*Caug)
    if N_pad != N:
        x_fold = jnp.pad(x_fold, ((0, N_pad - N), (0, 0)))
        adj_bf16 = jnp.pad(adj_bf16, ((0, N_pad - N), (0, N_pad - N)))
    x_fold_bf16 = x_fold.astype(jnp.bfloat16)    # aggregation operand (bf16 MXU path)
    x_fold_f32 = x_fold.astype(jnp.float32)      # self-projection operand (kept f32)

    # Fused weights; batch-block-diagonal so the finalize is a single folded matmul.
    w_other_aug = jnp.concatenate([w_other, b_other[None, :]], axis=0)     # (Caug, Cout)
    w_self_aug = jnp.concatenate([w_self, b_self[None, :]], axis=0)        # (Caug, Cout)
    if Cout_pad != Cout:
        pad = ((0, 0), (0, Cout_pad - Cout))
        w_other_aug = jnp.pad(w_other_aug, pad)
        w_self_aug = jnp.pad(w_self_aug, pad)
    eye_b = jnp.eye(B, dtype=jnp.float32)

    def _block_diag(w):                      # (Caug, Cout_pad) -> (B*Caug, B*Cout_pad)
        return (eye_b[:, None, :, None] * w[None, :, None, :]).reshape(BCaug, BCout)

    w_stack = jnp.stack([_block_diag(w_other_aug), _block_diag(w_self_aug)], axis=0)

    # ---- VMEM budget from actual buffer sizes (double buffering, (8,128) padding) ----
    def _tile_bytes(shape, itemsize):
        s = list(shape)
        s[-1] = _round_up(s[-1], 128)
        if len(s) >= 2:
            s[-2] = _round_up(s[-2], 8)
        n = 1
        for d in s:
            n *= d
        return n * itemsize

    vmem_need = (2 * _tile_bytes((tile, tile), 2)          # A tile (bf16), x2 buffers
                 + 2 * _tile_bytes((tile, BCaug), 2)       # x_fold bf16 (reduction slice)
                 + 2 * _tile_bytes((tile, BCaug), 4)       # x_fold f32 (row slice)
                 + 2 * _tile_bytes((2, BCaug, BCout), 4)   # fused weights
                 + 2 * _tile_bytes((tile, BCout), 4)       # output tile
                 + _tile_bytes((tile, BCaug), 4))          # f32 accumulator (single)
    vmem_limit = int(min(max(vmem_need + (4 << 20), 16 << 20), 60 << 20))

    # ---- advisory cost estimate for the XLA scheduler ----
    flops = 2 * N_pad * N_pad * BCaug + 4 * N_pad * BCaug * BCout
    bytes_accessed = (N_pad * N_pad * 2              # A streamed exactly once
                      + n_tiles * N_pad * BCaug * 2  # bf16 x_fold, refetched per row tile
                      + N_pad * BCaug * 4            # f32 x_fold, once per row tile
                      + 2 * BCaug * BCout * 4        # fused weights
                      + N_pad * BCout * 4)           # output
    cost = pl.CostEstimate(flops=int(flops), transcendentals=0,
                           bytes_accessed=int(bytes_accessed))

    out_fold = pl.pallas_call(
        gcn_kernel,
        out_shape=jax.ShapeDtypeStruct((N_pad, BCout), x_bnc.dtype),
        grid_spec=pltpu.PrefetchScalarGridSpec(
            num_scalar_prefetch=0,
            grid=(n_tiles, n_tiles),                     # reduction axis last
            in_specs=[
                pl.BlockSpec((tile, tile), lambda i, k: (i, k)),       # A tile
                pl.BlockSpec((tile, BCaug), lambda i, k: (k, 0)),      # [X|1] bf16 (k)
                pl.BlockSpec((tile, BCaug), lambda i, k: (i, 0)),      # [X|1] f32 (i)
                pl.BlockSpec((2, BCaug, BCout), lambda i, k: (0, 0, 0)),  # weights
            ],
            out_specs=pl.BlockSpec((tile, BCout), lambda i, k: (i, 0)),
            scratch_shapes=[pltpu.VMEM((tile, BCaug), jnp.float32)],
        ),
        compiler_params=pltpu.CompilerParams(
            dimension_semantics=("parallel", "arbitrary"),
            vmem_limit_bytes=vmem_limit,
        ),
        cost_estimate=cost,
    )(adj_bf16, x_fold_bf16, x_fold_f32, w_stack)

    # Unfold: (N_pad, B*Cout_pad) -> (B, N, Cout)
    out = out_fold[:N].reshape(N, B, Cout_pad)[:, :, :Cout]
    return jnp.transpose(out, (1, 0, 2))


def graph_convolution(x_ncl, w_self, b_self, w_other, b_other,
                      reduce_index, gather_index, *, max_tile=1024):
    """PyTorch-equivalent forward. x_ncl: (B, Cin, N) -> (B, Cout, N)."""
    N = x_ncl.shape[-1]
    # Dense aggregation matrix (glue; in practice precomputed once per graph).
    # A[r, g] += 1 per edge exactly reproduces index_add_ (duplicates accumulate).
    # bf16 is exact for integer edge multiplicities <= 256.
    adj = jnp.zeros((N, N), jnp.float32).at[reduce_index, gather_index].add(1.0)
    adj = adj.astype(jnp.bfloat16)
    x_bnc = jnp.transpose(x_ncl, (0, 2, 1))
    out_bnc = graph_convolution_pallas(x_bnc, w_self, b_self, w_other, b_other,
                                       adj, max_tile=max_tile)
    return jnp.transpose(out_bnc, (0, 2, 1))


def reference_jax(x_ncl, w_self, b_self, w_other, b_other, reduce_index, gather_index):
    """Pure-JAX f32 replica of the PyTorch forward (NCL layout), for verification."""
    ws = w_self.T   # (Cout, Cin): Conv1d(k=1) weight
    wo = w_other.T
    fs = jnp.einsum("oi,bin->bon", ws, x_ncl) + b_self.reshape(1, -1, 1)
    fo = jnp.einsum("oi,bin->bon", wo, x_ncl) + b_other.reshape(1, -1, 1)
    out = jnp.zeros_like(fs)
    out = out.at[..., reduce_index].add(fo[..., gather_index])
    return out + fs


if __name__ == "__main__":
    B, C_IN, C_OUT, N = 2, 4, 8, 16

    key = jax.random.PRNGKey(0)
    k_x, k_ws, k_bs, k_wo, k_bo = jax.random.split(key, 5)

    # Input in PyTorch NCL layout: (batch, in_channels, nodes)
    x_ncl = jax.random.normal(k_x, (B, C_IN, N), dtype=jnp.float32)
    w_self = jax.random.normal(k_ws, (C_IN, C_OUT), dtype=jnp.float32) * 0.1
    b_self = jax.random.normal(k_bs, (C_OUT,), dtype=jnp.float32) * 0.1
    w_other = jax.random.normal(k_wo, (C_IN, C_OUT), dtype=jnp.float32) * 0.1
    b_other = jax.random.normal(k_bo, (C_OUT,), dtype=jnp.float32) * 0.1

    # Ring graph: each node receives from its left and right neighbour.
    nodes = jnp.arange(N, dtype=jnp.int32)
    reduce_index = jnp.concatenate([nodes, nodes])
    gather_index = jnp.concatenate([(nodes + 1) % N, (nodes - 1) % N])

    out_ncl = graph_convolution(x_ncl, w_self, b_self, w_other, b_other,
                                reduce_index, gather_index)
    out_ncl = jax.block_until_ready(out_ncl)
    ref_ncl = reference_jax(x_ncl, w_self, b_self, w_other, b_other,
                            reduce_index, gather_index)
    # Tolerance loosened vs the pure-f32 reference: the aggregation path uses
    # bf16 X on the MXU (the perf-review-requested bf16 single-pass path).
    np.testing.assert_allclose(np.asarray(out_ncl), np.asarray(ref_ncl),
                               rtol=2e-2, atol=2e-2)

    # Second check: different batch (exercises the batch fold), node padding,
    # and the multi-tile reduction / accumulate (k > 0) path.
    B2, N2 = 3, 160
    x2 = jax.random.normal(jax.random.PRNGKey(1), (B2, C_IN, N2), dtype=jnp.float32)
    nodes2 = jnp.arange(N2, dtype=jnp.int32)
    r2 = jnp.concatenate([nodes2, nodes2])
    g2 = jnp.concatenate([(nodes2 + 1) % N2, (nodes2 - 1) % N2])
    out2 = graph_convolution(x2, w_self, b_self, w_other, b_other, r2, g2,
                             max_tile=128)
    out2 = jax.block_until_ready(out2)
    ref2 = reference_jax(x2, w_self, b_self, w_other, b_other, r2, g2)
    np.testing.assert_allclose(np.asarray(out2), np.asarray(ref2),
                               rtol=2e-2, atol=2e-2)

    print("KERNEL_OK")
</pallas_src>

<mosaic_0001>
module attributes {stable_mosaic.version = 11 : i64} {
  func.func @gcn_kernel(%arg0: i32, %arg1: i32, %arg2: memref<16x16xbf16, #tpu.memory_space<vmem>>, %arg3: memref<16x10xbf16, #tpu.memory_space<vmem>>, %arg4: memref<16x10xf32, #tpu.memory_space<vmem>>, %arg5: memref<2x10x256xf32, #tpu.memory_space<vmem>>, %arg6: memref<16x256xf32, #tpu.memory_space<vmem>>, %arg7: memref<16x10xf32, #tpu.memory_space<vmem>>) attributes {dimension_semantics = [#tpu.dimension_semantics<parallel>, #tpu.dimension_semantics<arbitrary>], iteration_bounds = array<i64: 1, 1>, scalar_prefetch = 0 : i64, scratch_operands = 1 : i64, tpu.core_type = #tpu.core_type<tc>, window_params = [{transform_indices = @transform_0, window_bounds = array<i64: 16, 16>}, {transform_indices = @transform_1, window_bounds = array<i64: 16, 10>}, {transform_indices = @transform_2, window_bounds = array<i64: 16, 10>}, {pipeline_mode = #tpu.pipeline_mode<synchronous>, transform_indices = @transform_3, window_bounds = array<i64: 2, 10, 256>}, {transform_indices = @transform_4, window_bounds = array<i64: 16, 256>}]} {
    %c0 = arith.constant 0 : index
    %c0_0 = arith.constant 0 : index
    %0 = vector.load %arg2[%c0, %c0_0] : memref<16x16xbf16, #tpu.memory_space<vmem>>, vector<16x16xbf16>
    %c0_1 = arith.constant 0 : index
    %c0_2 = arith.constant 0 : index
    %1 = vector.load %arg3[%c0_1, %c0_2] : memref<16x10xbf16, #tpu.memory_space<vmem>>, vector<16x10xbf16>
    %cst = arith.constant dense<0.000000e+00> : vector<16x10xf32>
    %2 = tpu.matmul %0, %1, %cst {dimension_numbers = #tpu.dot_dimension_numbers<[1], [0], [0], [1], [0, 0, 1, 1], [], []>} : vector<16x16xbf16>, vector<16x10xbf16>, vector<16x10xf32> -> vector<16x10xf32>
    %c0_i32 = arith.constant 0 : i32
    %3 = arith.cmpi eq, %arg1, %c0_i32 : i32
    %4 = arith.extui %3 : i1 to i32
    %c0_i32_3 = arith.constant 0 : i32
    %5 = arith.cmpi ne, %4, %c0_i32_3 : i32
    scf.if %5 {
      %c0_8 = arith.constant 0 : index
      %c0_9 = arith.constant 0 : index
      %12 = vector.load %arg7[%c0_8, %c0_9] : memref<16x10xf32, #tpu.memory_space<vmem>>, vector<16x10xf32>
      tpu.vector_store %arg7[%c0_8, %c0_9], %2 {strides = array<i32>} : memref<16x10xf32, #tpu.memory_space<vmem>>, vector<16x10xf32>,
    } else {
    }
    %c0_i32_4 = arith.constant 0 : i32
    %6 = arith.cmpi sgt, %arg1, %c0_i32_4 : i32
    %7 = arith.extui %6 : i1 to i32
    %c0_i32_5 = arith.constant 0 : i32
    %8 = arith.cmpi ne, %7, %c0_i32_5 : i32
    scf.if %8 {
      %c0_8 = arith.constant 0 : index
      %c0_9 = arith.constant 0 : index
      %12 = vector.load %arg7[%c0_8, %c0_9] : memref<16x10xf32, #tpu.memory_space<vmem>>, vector<16x10xf32>
      %13 = arith.addf %12, %2 : vector<16x10xf32>
      %c0_10 = arith.constant 0 : index
      %c0_11 = arith.constant 0 : index
      %14 = vector.load %arg7[%c0_10, %c0_11] : memref<16x10xf32, #tpu.memory_space<vmem>>, vector<16x10xf32>
      tpu.vector_store %arg7[%c0_10, %c0_11], %13 {strides = array<i32>} : memref<16x10xf32, #tpu.memory_space<vmem>>, vector<16x10xf32>,
    } else {
    }
    %c0_i32_6 = arith.constant 0 : i32
    %9 = arith.cmpi eq, %arg1, %c0_i32_6 : i32
    %10 = arith.extui %9 : i1 to i32
    %c0_i32_7 = arith.constant 0 : i32
    %11 = arith.cmpi ne, %10, %c0_i32_7 : i32
    scf.if %11 {
      %c0_8 = arith.constant 0 : index
      %c0_9 = arith.constant 0 : index
      %12 = vector.load %arg7[%c0_8, %c0_9] : memref<16x10xf32, #tpu.memory_space<vmem>>, vector<16x10xf32>
      %c0_10 = arith.constant 0 : index
      %c0_11 = arith.constant 0 : index
      %c0_12 = arith.constant 0 : index
      %13 = vector.load %arg5[%c0_10, %c0_11, %c0_12] : memref<2x10x256xf32, #tpu.memory_space<vmem>>, vector<1x10x256xf32>
      %14 = vector.shape_cast %13 : vector<1x10x256xf32> to vector<10x256xf32>
      %cst_13 = arith.constant dense<0.000000e+00> : vector<16x256xf32>
      %15 = tpu.matmul %12, %14, %cst_13 {dimension_numbers = #tpu.dot_dimension_numbers<[1], [0], [0], [1], [0, 0, 1, 1], [], []>} : vector<16x10xf32>, vector<10x256xf32>, vector<16x256xf32> -> vector<16x256xf32>
      %c0_14 = arith.constant 0 : index
      %c0_15 = arith.constant 0 : index
      %16 = vector.load %arg4[%c0_14, %c0_15] : memref<16x10xf32, #tpu.memory_space<vmem>>, vector<16x10xf32>
      %c1 = arith.constant 1 : index
      %c0_16 = arith.constant 0 : index
      %c0_17 = arith.constant 0 : index
      %17 = vector.load %arg5[%c1, %c0_16, %c0_17] : memref<2x10x256xf32, #tpu.memory_space<vmem>>, vector<1x10x256xf32>
      %18 = vector.shape_cast %17 : vector<1x10x256xf32> to vector<10x256xf32>
      %cst_18 = arith.constant dense<0.000000e+00> : vector<16x256xf32>
      %19 = tpu.matmul %16, %18, %cst_18 {dimension_numbers = #tpu.dot_dimension_numbers<[1], [0], [0], [1], [0, 0, 1, 1], [], []>} : vector<16x10xf32>, vector<10x256xf32>, vector<16x256xf32> -> vector<16x256xf32>
      %20 = arith.addf %15, %19 : vector<16x256xf32>
      %c0_19 = arith.constant 0 : index
      %c0_20 = arith.constant 0 : index
      %21 = vector.load %arg6[%c0_19, %c0_20] : memref<16x256xf32, #tpu.memory_space<vmem>>, vector<16x256xf32>
      tpu.vector_store %arg6[%c0_19, %c0_20], %20 {strides = array<i32>} : memref<16x256xf32, #tpu.memory_space<vmem>>, vector<16x256xf32>,
    } else {
    }
    return
  }
  func.func @transform_0(%arg0: i32, %arg1: i32) -> (i32, i32) {
    %c0_i32 = arith.constant 0 : i32
    return %arg0, %arg1 : i32, i32
  }
  func.func @transform_1(%arg0: i32, %arg1: i32) -> (i32, i32) {
    %c0_i32 = arith.constant 0 : i32
    %c0_i32_0 = arith.constant 0 : i32
    return %arg1, %c0_i32 : i32, i32
  }
  func.func @transform_2(%arg0: i32, %arg1: i32) -> (i32, i32) {
    %c0_i32 = arith.constant 0 : i32
    %c0_i32_0 = arith.constant 0 : i32
    return %arg0, %c0_i32 : i32, i32
  }
  func.func @transform_3(%arg0: i32, %arg1: i32) -> (i32, i32, i32) {
    %c0_i32 = arith.constant 0 : i32
    %c0_i32_0 = arith.constant 0 : i32
    %c0_i32_1 = arith.constant 0 : i32
    %c0_i32_2 = arith.constant 0 : i32
    return %c0_i32, %c0_i32_0, %c0_i32_1 : i32, i32, i32
  }
  func.func @transform_4(%arg0: i32, %arg1: i32) -> (i32, i32) {
    %c0_i32 = arith.constant 0 : i32
    %c0_i32_0 = arith.constant 0 : i32
    return %arg0, %c0_i32 : i32, i32
  }
}

</mosaic_0001>

<llo_original>
// kernel: tpu_custom_call.1
$region0: #{tpu_custom_call.1}
  #allocation0 [shape = 'u32[]', space=smem, size = 0x4, offset = 0x4, fixed_abs, tag = 'smem constant byte address 0x4 - core index']
  #allocation1 [shape = 'u32[72,128]{1,0:T(1,128)}', space=vmem, size = 0x9000, scoped, tag = 'internal scratch']
  #allocation2 [shape = 'f32[16,10]{1,0:T(8,128)}', space=vmem, size = 0x2000, scoped, tag = 'scratch operand']
  %s0 = inlined_call_operand.vmem [shape: bf16[16,16], index: 0, kind: input, shape index: {}]
  %s1 = inlined_call_operand.vmem [shape: bf16[16,10], index: 1, kind: input, shape index: {}]
  %s2 = inlined_call_operand.vmem [shape: f32[16,10], index: 2, kind: input, shape index: {}]
  %s3 = inlined_call_operand.vmem [shape: f32[2,10,256], index: 3, kind: input, shape index: {}]
  %s4 = inlined_call_operand.hbm [shape: f32[16,256], index: 4, kind: output, shape index: {}]
  %s5 = sld [smem:[#allocation0]]
  $region38: #{tpu_custom_call.1} parent=0
    _
  %s7 = ssub.s32 1, %s5
  %s8 = scalar_select 0, %s7, %s5
  $region1: #{tpu_custom_call.1} parent=0
    #allocation3 [shape = 'u8[16384]{0}', space=vmem, size = 0x4000, scoped, tag = 'output window, operand 0, single buffered']
    #allocation4 [shape = 's32[1]{0}', space=sflag, size = 0x4, scoped, tag = 'scoped memory for tpu_custom_call.1']
    %9 = vsyncpa [#allocation4], 0
    // Predicated region
    $region2: #{tpu_custom_call.1} parent=1 // pred_check
      _
    $region3: #{tpu_custom_call.1} parent=1 // pred_check_branch
      %11 = sbr.rel (0) target = $region5
    $region4: #{tpu_custom_call.1} parent=1 // pred_region
      _
    $region5: #{tpu_custom_call.1} parent=1 // pred_fallthru
      _
    // Predicated region
    $region6: #{tpu_custom_call.1} parent=1 // pred_check
      _
    $region7: #{tpu_custom_call.1} parent=1 // pred_check_branch
      %13 = sbr.rel (0) target = $region9
    $region8: #{tpu_custom_call.1} parent=1 // pred_region
      _
    $region9: #{tpu_custom_call.1} parent=1 // pred_fallthru
      _
    // Predicated region
    $region10: #{tpu_custom_call.1} parent=1 // pred_check
      _
    $region11: #{tpu_custom_call.1} parent=1 // pred_check_branch
      %15 = sbr.rel (0) target = $region13
    $region12: #{tpu_custom_call.1} parent=1 // pred_region
      _
    $region13: #{tpu_custom_call.1} parent=1 // pred_fallthru
      _
    // Predicated region
    $region14: #{tpu_custom_call.1} parent=1 // pred_check
      _
    $region15: #{tpu_custom_call.1} parent=1 // pred_check_branch
      %17 = sbr.rel (0) target = $region17
    $region16: #{tpu_custom_call.1} parent=1 // pred_region
      _
    $region17: #{tpu_custom_call.1} parent=1 // pred_fallthru
      _
    %v19 = vld [vmem:[%s0] sm:$0xf]
    %v20 = vld [vmem:[%s0 + $0x4] sm:$0xf]
    %v21 = vld [vmem:[%s1] sm:$0xf]
    %v22 = vld [vmem:[%s1 + $0x4] sm:$0xf]
    %v25 = vunpack.c.l.b16 %v19
    %v26 = vunpack.c.l.b16 %v20
    %v27 = vpack.c.b16 %v26, %v25
    %v30 = vunpack.c.l.b16 %v21
    %v31 = vunpack.c.l.b16 %v22
    %v32 = vpack.c.b16 %v31, %v30
    %vm34 = vcmask 130048
    %v36 = vsel %vm34, %v27, 0
    %38 = vmatpush.bf16.msra.mxu0 0
    %39 = vmatpush.bf16.msra.mxu0 0
    %40 = vmatpush.bf16.msra.mxu0 0
    %41 = vmatpush.bf16.msra.mxu0 0
    %42 = vmatpush.bf16.msra.mxu0 0
    %43 = vmatpush.bf16.msra.mxu0 0
    %44 = vmatpush.bf16.msra.mxu0 0
    %45 = vmatpush.bf16.msra.mxu0 %v32
    %46 = vmatmul.bf16.gmra.mxu0 %v36
    %v47 = vpop.f32.mrf.mxu0
    %v48 = vadd.f32 0.0, %v47
    %v49 = vpop.f32.mrf.mxu0
    %v50 = vadd.f32 0.0, %v49
    %51 = vdwg.mxu0
    %p52 = scmp.eq.s32.totalorder 0, 0
    // Predicated region
    $region18: #{tpu_custom_call.1} parent=1 // pred_check
      %p53 = pneg %p52
    $region19: #{tpu_custom_call.1} parent=1 // pred_check_branch
      %55 = sbr.rel (%p53) target = $region21
    $region20: #{tpu_custom_call.1} parent=1 // pred_region
      %vm56 = vcmask 80896
      %57 = vst.msk [vmem:[#allocation2] sm:$0xff] %vm56, %v48
      %58 = vst.msk [vmem:[#allocation2 + $0x8] sm:$0xff] %vm56, %v50
    $region21: #{tpu_custom_call.1} parent=1 // pred_fallthru
      _
    %p59 = scmp.gt.s32.totalorder 0, 0
    // Predicated region
    $region22: #{tpu_custom_call.1} parent=1 // pred_check
      %p60 = pneg %p59
    $region23: #{tpu_custom_call.1} parent=1 // pred_check_branch
      %62 = sbr.rel (%p60) target = $region25
    $region24: #{tpu_custom_call.1} parent=1 // pred_region
      %v63 = vld [vmem:[#allocation2] sm:$0xff]
      %v64 = vld [vmem:[#allocation2 + $0x8] sm:$0xff]
      %v65 = vadd.f32 %v63, %v48
      %v66 = vadd.f32 %v64, %v50
      %vm67 = vcmask 80896
      %68 = vst.msk [vmem:[#allocation2] sm:$0xff] %vm67, %v65
      %69 = vst.msk [vmem:[#allocation2 + $0x8] sm:$0xff] %vm67, %v66
    $region25: #{tpu_custom_call.1} parent=1 // pred_fallthru
      _
    // Predicated region
    $region26: #{tpu_custom_call.1} parent=1 // pred_check
      %p70 = pneg %p52
    $region27: #{tpu_custom_call.1} parent=1 // pred_check_branch
      %72 = sbr.rel (%p70) target = $region29
    $region28: #{tpu_custom_call.1} parent=1 // pred_region
      %v73 = vld [vmem:[#allocation2] sm:$0xff]
      %v74 = vld [vmem:[#allocation2 + $0x8] sm:$0xff]
      %v75 = vld [vmem:[%s3] sm:$0xff]
      %v76 = vld [vmem:[%s3 + $0x8] sm:$0xff]
      %v77 = vld [vmem:[%s3 + $0x10] sm:$0x3]
      %v78 = vld [vmem:[%s3 + $0x18] sm:$0x3]
      %v79 = vld [vmem:[%s2] sm:$0xff]
      %v80 = vld [vmem:[%s2 + $0x8] sm:$0xff]
      %s81 = scalar_lea.vmem %s3, 32
      %v82 = vld [vmem:[%s81] sm:$0xff]
      %v83 = vld [vmem:[%s81 + $0x8] sm:$0xff]
      %v84 = vld [vmem:[%s81 + $0x10] sm:$0x3]
      %v85 = vld [vmem:[%s81 + $0x18] sm:$0x3]
      %vm86 = vcmask 80896
      %v88 = vsel %vm86, %v79, 0
      %v91 = vsel %vm86, %v80, 0
      %vm93 = vcmask 1041408
      %v95 = vsel %vm93, %v84, 0
      %v98 = vsel %vm93, %v85, 0
      %100 = vmatpush.msra.mxu0 0.0
      %101 = vmatpush.msra.mxu0 0.0
      %102 = vmatpush.msra.mxu0 0.0
      %103 = vmatpush.msra.mxu0 0.0
      %104 = vmatpush.msra.mxu0 0.0
      %105 = vmatpush.msra.mxu0 0.0
      %106 = vmatpush.msra.mxu0 0.0
      %107 = vmatpush.msra.mxu0 0.0
      %108 = vmatpush.msra.mxu0 0.0
      %109 = vmatpush.msra.mxu0 0.0
      %110 = vmatpush.msra.mxu0 0.0
      %111 = vmatpush.msra.mxu0 0.0
      %112 = vmatpush.msra.mxu0 0.0
      %113 = vmatpush.msra.mxu0 0.0
      %114 = vmatpush.msra.mxu0 %v95
      %115 = vmatpush.msra.mxu0 %v82
      %116 = vmatmul.f32.gmra.mxu0 %v88
      %v117 = vpop.f32.mrf.mxu0
      %v118 = vadd.f32 0.0, %v117
      %119 = vmatmul.f32.gmra.mxu0 %v91
      %v120 = vpop.f32.mrf.mxu0
      %v121 = vadd.f32 0.0, %v120
      %122 = vdwg.mxu0
      %123 = vmatpush.msra.mxu0 0.0
      %124 = vmatpush.msra.mxu0 0.0
      %125 = vmatpush.msra.mxu0 0.0
      %126 = vmatpush.msra.mxu0 0.0
      %127 = vmatpush.msra.mxu0 0.0
      %128 = vmatpush.msra.mxu0 0.0
      %129 = vmatpush.msra.mxu0 0.0
      %130 = vmatpush.msra.mxu0 0.0
      %131 = vmatpush.msra.mxu0 0.0
      %132 = vmatpush.msra.mxu0 0.0
      %133 = vmatpush.msra.mxu0 0.0
      %134 = vmatpush.msra.mxu0 0.0
      %135 = vmatpush.msra.mxu0 0.0
      %136 = vmatpush.msra.mxu0 0.0
      %137 = vmatpush.msra.mxu0 %v98
      %138 = vmatpush.msra.mxu0 %v83
      %139 = vmatmul.f32.gmra.mxu0 %v88
      %v140 = vpop.f32.mrf.mxu0
      %v141 = vadd.f32 0.0, %v140
      %142 = vmatmul.f32.gmra.mxu0 %v91
      %v143 = vpop.f32.mrf.mxu0
      %v144 = vadd.f32 0.0, %v143
      %145 = vdwg.mxu0
      %v147 = vsel %vm86, %v73, 0
      %v150 = vsel %vm86, %v74, 0
      %v153 = vsel %vm93, %v77, 0
      %v156 = vsel %vm93, %v78, 0
      %158 = vmatpush.msra.mxu0 0.0
      %159 = vmatpush.msra.mxu0 0.0
      %160 = vmatpush.msra.mxu0 0.0
      %161 = vmatpush.msra.mxu0 0.0
      %162 = vmatpush.msra.mxu0 0.0
      %163 = vmatpush.msra.mxu0 0.0
      %164 = vmatpush.msra.mxu0 0.0
      %165 = vmatpush.msra.mxu0 0.0
      %166 = vmatpush.msra.mxu0 0.0
      %167 = vmatpush.msra.mxu0 0.0
      %168 = vmatpush.msra.mxu0 0.0
      %169 = vmatpush.msra.mxu0 0.0
      %170 = vmatpush.msra.mxu0 0.0
      %171 = vmatpush.msra.mxu0 0.0
      %172 = vmatpush.msra.mxu0 %v153
      %173 = vmatpush.msra.mxu0 %v75
      %174 = vmatmul.f32.gmra.mxu0 %v147
      %v175 = vpop.f32.mrf.mxu0
      %v176 = vadd.f32 %v118, %v175
      %177 = vmatmul.f32.gmra.mxu0 %v150
      %v178 = vpop.f32.mrf.mxu0
      %v179 = vadd.f32 %v121, %v178
      %180 = vdwg.mxu0
      %181 = vmatpush.msra.mxu0 0.0
      %182 = vmatpush.msra.mxu0 0.0
      %183 = vmatpush.msra.mxu0 0.0
      %184 = vmatpush.msra.mxu0 0.0
      %185 = vmatpush.msra.mxu0 0.0
      %186 = vmatpush.msra.mxu0 0.0
      %187 = vmatpush.msra.mxu0 0.0
      %188 = vmatpush.msra.mxu0 0.0
      %189 = vmatpush.msra.mxu0 0.0
      %190 = vmatpush.msra.mxu0 0.0
      %191 = vmatpush.msra.mxu0 0.0
      %192 = vmatpush.msra.mxu0 0.0
      %193 = vmatpush.msra.mxu0 0.0
      %194 = vmatpush.msra.mxu0 0.0
      %195 = vmatpush.msra.mxu0 %v156
      %196 = vmatpush.msra.mxu0 %v76
      %197 = vmatmul.f32.gmra.mxu0 %v147
      %v198 = vpop.f32.mrf.mxu0
      %v199 = vadd.f32 %v141, %v198
      %200 = vmatmul.f32.gmra.mxu0 %v150
      %v201 = vpop.f32.mrf.mxu0
      %v202 = vadd.f32 %v144, %v201
      %203 = vdwg.mxu0
      %204 = vst [vmem:[#allocation3] sm:$0xff] %v176
      %205 = vst [vmem:[#allocation3 + $0x8] sm:$0xff] %v199
      %206 = vst [vmem:[#allocation3 + $0x10] sm:$0xff] %v179
      %207 = vst [vmem:[#allocation3 + $0x18] sm:$0xff] %v202
    $region29: #{tpu_custom_call.1} parent=1 // pred_fallthru
      _
    // Predicated region
    $region30: #{tpu_custom_call.1} parent=1 // pred_check
      _
    $region31: #{tpu_custom_call.1} parent=1 // pred_check_branch
      %209 = sbr.rel (0) target = $region33
    $region32: #{tpu_custom_call.1} parent=1 // pred_region
      %211 = vsyncadd [#allocation4], 0
      %s212 = sshll.u32 [#allocation3], 4
      %s213 = int_to_ptr.vmem [resolvable:$true] %s212
      %s214 = sshll.u32 %s4, 4
      %s215 = int_to_ptr.hbm [resolvable:$true] %s214
      %220 = dma.vmem_to_hbm [thread:$0]  %s213, 512, %s215, [#allocation4], 256, 256, 16
    $region33: #{tpu_custom_call.1} parent=1 // pred_fallthru
      _
    // Predicated region
    $region34: #{tpu_custom_call.1} parent=1 // pred_check
      _
    $region35: #{tpu_custom_call.1} parent=1 // pred_check_branch
      %222 = sbr.rel (0) target = $region37
    $region36: #{tpu_custom_call.1} parent=1 // pred_region
      %224 = dma.done [#allocation4], 512
    $region37: #{tpu_custom_call.1} parent=1 // pred_fallthru
      _
    %225 = vsyncpa [#allocation4], 1

</llo_original>
